<compile_context>
chip_gen: v7x
topology: tpu7x:2x2x1
jax: 0.10.0
libtpu: 0.0.40
codegen_flags: <defaults>
</compile_context>

<pallas_src>
import numpy as np
import jax
import jax.numpy as jnp
from jax import lax
from jax.experimental import pallas as pl
from jax.experimental.pallas import tpu as pltpu


def _make_wloss_kernel(lam: float, sinkhorn_iter: int):
    eps = 1e-8
    neg_inv_lam = -1.0 / lam

    def kernel(pred_ref, target_ref, cost_ref, wnorm_ref, grad_ref):
        pred = pred_ref[...]      # (B, na)
        target = target_ref[...]  # (B, nb)
        cost = cost_ref[...]      # (na, nb)

        B, na = pred.shape
        nb = target.shape[1]

        # K = exp(-cost / lam); -1/lam pre-folded into a constant multiply.
        K = jnp.exp(cost * neg_inv_lam)   # (na, nb)
        KT = K.T                          # hoisted out of the loop (nb, na)

        log_a = jnp.log(pred + eps)       # (B, na)
        log_b = jnp.log(target + eps)     # (B, nb)

        log_u0 = jnp.full((B, na), -np.log(na), dtype=jnp.float32)
        log_v0 = jnp.full((B, nb), -np.log(nb), dtype=jnp.float32)

        eps_sq = jnp.float32(eps * eps)

        def cond(carry):
            i, _, _, done = carry
            return jnp.logical_and(i < sinkhorn_iter, jnp.logical_not(done))

        def body(carry):
            i, log_u, log_v, _ = carry
            log_u_max = jnp.max(log_u, axis=1, keepdims=True)            # (B,1)
            u_stab = jnp.exp(log_u - log_u_max + eps)                    # (B,na)
            # torch.mm(K.t(), u_stab.t()).t()  ==  u_stab @ K
            new_log_v = (log_b
                         - jnp.log(jnp.dot(u_stab, K,
                                           preferred_element_type=jnp.float32))
                         - log_u_max)                                    # (B,nb)
            log_v_max = jnp.max(new_log_v, axis=1, keepdims=True)        # (B,1)
            v_stab = jnp.exp(new_log_v - log_v_max)                      # (B,nb)
            # torch.mm(K, v_stab.t()).t()  ==  v_stab @ K.T  (KT precomputed)
            new_log_u = (log_a
                         - jnp.log(jnp.dot(v_stab, KT,
                                           preferred_element_type=jnp.float32) + eps)
                         - log_v_max)                                    # (B,na)

            # ||log_u - new_log_u|| / ||new_log_u|| < eps, in squared form
            # (no sqrt / divide on the scalar critical path).
            diff = log_u - new_log_u
            done_new = (jnp.sum(diff * diff)
                        < eps_sq * jnp.sum(new_log_u * new_log_u))
            return i + 1, new_log_u, new_log_v, done_new

        _, log_u, log_v, _ = lax.while_loop(
            cond, body,
            (jnp.int32(0), log_u0, log_v0, jnp.array(False)))

        # ---- epilogue (KM built here, already transposed, so it is not
        #      resident through the Sinkhorn loop) -------------------------
        KMT = (cost * K).T                                               # (nb, na)
        log_v_max = jnp.max(log_v, axis=1, keepdims=True)                # (B,1)
        v_stab = jnp.exp(log_v - log_v_max)                              # (B,nb)
        # torch.mm(KM, v_stab.t()).t()  ==  v_stab @ KM.T
        logcostpart1 = (jnp.log(jnp.dot(v_stab, KMT,
                                        preferred_element_type=jnp.float32) + eps)
                        + log_v_max)                                     # (B,na)
        wnorm = jnp.sum(jnp.mean(jnp.exp(log_u + logcostpart1), axis=0))

        grad = log_u * lam
        grad = grad - jnp.mean(grad, axis=1, keepdims=True)
        # Second subtraction is numerically ~no-op; kept for reference fidelity
        # (epilogue-only, negligible cost).
        grad = grad - jnp.mean(grad, axis=1, keepdims=True)
        grad = grad / B

        wnorm_ref[...] = jnp.reshape(wnorm, (1, 1))
        grad_ref[...] = grad

    return kernel


def wloss_layer(pred, target, cost, *, lam=100.0, sinkhorn_iter=50):
    """JAX/Pallas equivalent of WlossLayer.forward.

    pred:   (B, K) float32
    target: (B, L) float32
    cost:   (>=K, >=L) float32 cost matrix (cropped to [:K, :L] like the torch code)
    Returns (wnorm of shape (1,), grad_input of shape (B, K)).
    """
    pred = jnp.asarray(pred, jnp.float32)
    target = jnp.asarray(target, jnp.float32)
    B, na = pred.shape
    nb = target.shape[1]
    cost = jnp.asarray(cost, jnp.float32)[:na, :nb]

    kernel = _make_wloss_kernel(float(lam), int(sinkhorn_iter))

    # Size scoped VMEM from the resident buffers (cost, K, KT, KMT + batch vecs),
    # with 2x headroom; clamp to [32 MiB, 64 MiB] so it is valid on all chips
    # (v7x physical VMEM per TC is 64 MiB).
    mat_bytes = 4 * na * nb * 4
    vec_bytes = 10 * B * max(na, nb) * 4
    vmem_limit = int(min(64 << 20, max(32 << 20, 2 * (mat_bytes + vec_bytes))))

    wnorm, grad = pl.pallas_call(
        kernel,
        out_shape=(
            jax.ShapeDtypeStruct((1, 1), jnp.float32),
            jax.ShapeDtypeStruct((B, na), jnp.float32),
        ),
        in_specs=[
            pl.BlockSpec(memory_space=pltpu.MemorySpace.VMEM),
            pl.BlockSpec(memory_space=pltpu.MemorySpace.VMEM),
            pl.BlockSpec(memory_space=pltpu.MemorySpace.VMEM),
        ],
        out_specs=(
            pl.BlockSpec(memory_space=pltpu.MemorySpace.VMEM),
            pl.BlockSpec(memory_space=pltpu.MemorySpace.VMEM),
        ),
        compiler_params=pltpu.CompilerParams(vmem_limit_bytes=vmem_limit),
    )(pred, target, cost)

    return wnorm.reshape((1,)), grad


if __name__ == "__main__":
    key = jax.random.PRNGKey(0)
    k1, k2 = jax.random.split(key)

    B, K, L = 8, 128, 128  # batch of distributions over K / L mass points

    # Probability-mass inputs (positive, rows sum to 1), like the intended usage.
    pred = jax.nn.softmax(jax.random.normal(k1, (B, K), jnp.float32), axis=-1)
    target = jax.nn.softmax(jax.random.normal(k2, (B, L), jnp.float32), axis=-1)

    # Deterministic ground cost: |i - j| / K between mass points.
    ii = jnp.arange(K, dtype=jnp.float32)[:, None]
    jj = jnp.arange(L, dtype=jnp.float32)[None, :]
    cost = jnp.abs(ii - jj) / K

    wnorm, grad_input = wloss_layer(pred, target, cost, lam=100.0, sinkhorn_iter=50)
    jax.block_until_ready((wnorm, grad_input))

    assert wnorm.shape == (1,)
    assert grad_input.shape == (B, K)
    assert bool(jnp.isfinite(wnorm).all()) and bool(jnp.isfinite(grad_input).all())

    print("KERNEL_OK")
</pallas_src>

<mosaic_0001>
module attributes {stable_mosaic.version = 11 : i64} {
  func.func @kernel(%arg0: memref<8x128xf32, #tpu.memory_space<vmem>>, %arg1: memref<8x128xf32, #tpu.memory_space<vmem>>, %arg2: memref<128x128xf32, #tpu.memory_space<vmem>>, %arg3: memref<1x1xf32, #tpu.memory_space<vmem>>, %arg4: memref<8x128xf32, #tpu.memory_space<vmem>>) attributes {dimension_semantics = [], scalar_prefetch = 0 : i64, scratch_operands = 0 : i64, tpu.core_type = #tpu.core_type<tc>} {
    %c0 = arith.constant 0 : index
    %c0_0 = arith.constant 0 : index
    %0 = vector.load %arg0[%c0, %c0_0] : memref<8x128xf32, #tpu.memory_space<vmem>>, vector<8x128xf32>
    %c0_1 = arith.constant 0 : index
    %c0_2 = arith.constant 0 : index
    %1 = vector.load %arg1[%c0_1, %c0_2] : memref<8x128xf32, #tpu.memory_space<vmem>>, vector<8x128xf32>
    %c0_3 = arith.constant 0 : index
    %c0_4 = arith.constant 0 : index
    %2 = vector.load %arg2[%c0_3, %c0_4] : memref<128x128xf32, #tpu.memory_space<vmem>>, vector<128x128xf32>
    %cst = arith.constant -0.00999999977 : f32
    %3 = vector.broadcast %cst : f32 to vector<128x128xf32>
    %4 = arith.mulf %2, %3 : vector<128x128xf32>
    %5 = math.exp %4 : vector<128x128xf32>
    %6 = tpu.transpose %5, [1, 0] : vector<128x128xf32> -> vector<128x128xf32>
    %cst_5 = arith.constant 9.99999993E-9 : f32
    %7 = vector.broadcast %cst_5 : f32 to vector<8x128xf32>
    %8 = arith.addf %0, %7 : vector<8x128xf32>
    %9 = math.log %8 : vector<8x128xf32>
    %cst_6 = arith.constant 9.99999993E-9 : f32
    %10 = vector.broadcast %cst_6 : f32 to vector<8x128xf32>
    %11 = arith.addf %1, %10 : vector<8x128xf32>
    %12 = math.log %11 : vector<8x128xf32>
    %cst_7 = arith.constant -4.85203028 : f32
    %13 = vector.broadcast %cst_7 : f32 to vector<8x128xf32>
    %cst_8 = arith.constant -4.85203028 : f32
    %14 = vector.broadcast %cst_8 : f32 to vector<8x128xf32>
    %cst_9 = arith.constant 1.000000e-16 : f32
    %c0_i32 = arith.constant 0 : i32
    %false = arith.constant false
    %15:4 = scf.while (%arg5 = %c0_i32, %arg6 = %13, %arg7 = %14, %arg8 = %false) : (i32, vector<8x128xf32>, vector<8x128xf32>, i1) -> (i32, vector<8x128xf32>, vector<8x128xf32>, i1) {
      %c50_i32 = arith.constant 50 : i32
      %57 = arith.cmpi slt, %arg5, %c50_i32 : i32
      %true = arith.constant true
      %58 = arith.xori %arg8, %true : i1
      %59 = arith.andi %57, %58 : i1
      scf.condition(%59) %arg5, %arg6, %arg7, %arg8 : i32, vector<8x128xf32>, vector<8x128xf32>, i1
    } do {
    ^bb0(%arg5: i32, %arg6: vector<8x128xf32>, %arg7: vector<8x128xf32>, %arg8: i1):
      %cst_26 = arith.constant dense<0xFF800000> : vector<8xf32>
      %57 = vector.multi_reduction <maximumf>, %arg6, %cst_26 [1] : vector<8x128xf32> to vector<8xf32>
      %58 = vector.shape_cast %57 : vector<8xf32> to vector<8x1xf32>
      %59 = vector.broadcast %58 : vector<8x1xf32> to vector<8x128xf32>
      %60 = arith.subf %arg6, %59 : vector<8x128xf32>
      %cst_27 = arith.constant 9.99999993E-9 : f32
      %61 = vector.broadcast %cst_27 : f32 to vector<8x128xf32>
      %62 = arith.addf %60, %61 : vector<8x128xf32>
      %63 = math.exp %62 : vector<8x128xf32>
      %cst_28 = arith.constant dense<0.000000e+00> : vector<8x128xf32>
      %64 = tpu.matmul %63, %5, %cst_28 {dimension_numbers = #tpu.dot_dimension_numbers<[1], [0], [0], [1], [0, 0, 1, 1], [], []>} : vector<8x128xf32>, vector<128x128xf32>, vector<8x128xf32> -> vector<8x128xf32>
      %65 = math.log %64 : vector<8x128xf32>
      %66 = arith.subf %12, %65 : vector<8x128xf32>
      %67 = vector.broadcast %58 : vector<8x1xf32> to vector<8x128xf32>
      %68 = arith.subf %66, %67 : vector<8x128xf32>
      %cst_29 = arith.constant dense<0xFF800000> : vector<8xf32>
      %69 = vector.multi_reduction <maximumf>, %68, %cst_29 [1] : vector<8x128xf32> to vector<8xf32>
      %70 = vector.shape_cast %69 : vector<8xf32> to vector<8x1xf32>
      %71 = vector.broadcast %70 : vector<8x1xf32> to vector<8x128xf32>
      %72 = arith.subf %68, %71 : vector<8x128xf32>
      %73 = math.exp %72 : vector<8x128xf32>
      %cst_30 = arith.constant dense<0.000000e+00> : vector<8x128xf32>
      %74 = tpu.matmul %73, %6, %cst_30 {dimension_numbers = #tpu.dot_dimension_numbers<[1], [0], [0], [1], [0, 0, 1, 1], [], []>} : vector<8x128xf32>, vector<128x128xf32>, vector<8x128xf32> -> vector<8x128xf32>
      %cst_31 = arith.constant 9.99999993E-9 : f32
      %75 = vector.broadcast %cst_31 : f32 to vector<8x128xf32>
      %76 = arith.addf %74, %75 : vector<8x128xf32>
      %77 = math.log %76 : vector<8x128xf32>
      %78 = arith.subf %9, %77 : vector<8x128xf32>
      %79 = vector.broadcast %70 : vector<8x1xf32> to vector<8x128xf32>
      %80 = arith.subf %78, %79 : vector<8x128xf32>
      %81 = arith.subf %arg6, %80 : vector<8x128xf32>
      %82 = arith.mulf %81, %81 : vector<8x128xf32>
      %83 = vector.shape_cast %82 : vector<8x128xf32> to vector<1x8x128xf32>
      %cst_32 = arith.constant dense<0.000000e+00> : vector<1xf32>
      %84 = vector.multi_reduction <add>, %83, %cst_32 [1, 2] : vector<1x8x128xf32> to vector<1xf32>
      %85 = vector.shape_cast %84 : vector<1xf32> to vector<1x1x1xf32>
      %86 = vector.extract %85[0, 0, 0] : f32 from vector<1x1x1xf32>
      %87 = arith.mulf %80, %80 : vector<8x128xf32>
      %88 = vector.shape_cast %87 : vector<8x128xf32> to vector<1x8x128xf32>
      %cst_33 = arith.constant dense<0.000000e+00> : vector<1xf32>
      %89 = vector.multi_reduction <add>, %88, %cst_33 [1, 2] : vector<1x8x128xf32> to vector<1xf32>
      %90 = vector.shape_cast %89 : vector<1xf32> to vector<1x1x1xf32>
      %91 = vector.extract %90[0, 0, 0] : f32 from vector<1x1x1xf32>
      %92 = arith.mulf %cst_9, %91 : f32
      %93 = arith.cmpf olt, %86, %92 : f32
      %c1_i32 = arith.constant 1 : i32
      %94 = arith.addi %arg5, %c1_i32 : i32
      scf.yield %94, %80, %68, %93 : i32, vector<8x128xf32>, vector<8x128xf32>, i1
    }
    %16 = arith.mulf %2, %5 : vector<128x128xf32>
    %17 = tpu.transpose %16, [1, 0] : vector<128x128xf32> -> vector<128x128xf32>
    %cst_10 = arith.constant dense<0xFF800000> : vector<8xf32>
    %18 = vector.multi_reduction <maximumf>, %15#2, %cst_10 [1] : vector<8x128xf32> to vector<8xf32>
    %19 = vector.shape_cast %18 : vector<8xf32> to vector<8x1xf32>
    %20 = vector.broadcast %19 : vector<8x1xf32> to vector<8x128xf32>
    %21 = arith.subf %15#2, %20 : vector<8x128xf32>
    %22 = math.exp %21 : vector<8x128xf32>
    %cst_11 = arith.constant dense<0.000000e+00> : vector<8x128xf32>
    %23 = tpu.matmul %22, %17, %cst_11 {dimension_numbers = #tpu.dot_dimension_numbers<[1], [0], [0], [1], [0, 0, 1, 1], [], []>} : vector<8x128xf32>, vector<128x128xf32>, vector<8x128xf32> -> vector<8x128xf32>
    %cst_12 = arith.constant 9.99999993E-9 : f32
    %24 = vector.broadcast %cst_12 : f32 to vector<8x128xf32>
    %25 = arith.addf %23, %24 : vector<8x128xf32>
    %26 = math.log %25 : vector<8x128xf32>
    %27 = vector.broadcast %19 : vector<8x1xf32> to vector<8x128xf32>
    %28 = arith.addf %26, %27 : vector<8x128xf32>
    %29 = arith.addf %15#1, %28 : vector<8x128xf32>
    %30 = math.exp %29 : vector<8x128xf32>
    %cst_13 = arith.constant dense<0.000000e+00> : vector<128xf32>
    %31 = vector.multi_reduction <add>, %30, %cst_13 [0] : vector<8x128xf32> to vector<128xf32>
    %cst_14 = arith.constant 8.000000e+00 : f32
    %32 = vector.broadcast %cst_14 : f32 to vector<128xf32>
    %33 = arith.divf %31, %32 : vector<128xf32>
    %34 = vector.shape_cast %33 : vector<128xf32> to vector<1x128xf32>
    %cst_15 = arith.constant dense<0.000000e+00> : vector<1xf32>
    %35 = vector.multi_reduction <add>, %34, %cst_15 [1] : vector<1x128xf32> to vector<1xf32>
    %36 = vector.shape_cast %35 : vector<1xf32> to vector<1x1xf32>
    %37 = vector.extract %36[0, 0] : f32 from vector<1x1xf32>
    %cst_16 = arith.constant 1.000000e+02 : f32
    %38 = vector.broadcast %cst_16 : f32 to vector<8x128xf32>
    %39 = arith.mulf %15#1, %38 : vector<8x128xf32>
    %cst_17 = arith.constant dense<0.000000e+00> : vector<8xf32>
    %40 = vector.multi_reduction <add>, %39, %cst_17 [1] : vector<8x128xf32> to vector<8xf32>
    %41 = vector.shape_cast %40 : vector<8xf32> to vector<8x1xf32>
    %cst_18 = arith.constant 1.280000e+02 : f32
    %42 = vector.broadcast %cst_18 : f32 to vector<8x1xf32>
    %43 = arith.divf %41, %42 : vector<8x1xf32>
    %44 = vector.broadcast %43 : vector<8x1xf32> to vector<8x128xf32>
    %45 = arith.subf %39, %44 : vector<8x128xf32>
    %cst_19 = arith.constant dense<0.000000e+00> : vector<8xf32>
    %46 = vector.multi_reduction <add>, %45, %cst_19 [1] : vector<8x128xf32> to vector<8xf32>
    %47 = vector.shape_cast %46 : vector<8xf32> to vector<8x1xf32>
    %cst_20 = arith.constant 1.280000e+02 : f32
    %48 = vector.broadcast %cst_20 : f32 to vector<8x1xf32>
    %49 = arith.divf %47, %48 : vector<8x1xf32>
    %50 = vector.broadcast %49 : vector<8x1xf32> to vector<8x128xf32>
    %51 = arith.subf %45, %50 : vector<8x128xf32>
    %cst_21 = arith.constant 8.000000e+00 : f32
    %52 = vector.broadcast %cst_21 : f32 to vector<8x128xf32>
    %53 = arith.divf %51, %52 : vector<8x128xf32>
    %54 = vector.broadcast %37 : f32 to vector<1x1xf32>
    %c0_22 = arith.constant 0 : index
    %c0_23 = arith.constant 0 : index
    %55 = vector.load %arg3[%c0_22, %c0_23] : memref<1x1xf32, #tpu.memory_space<vmem>>, vector<1x1xf32>
    tpu.vector_store %arg3[%c0_22, %c0_23], %54 {strides = array<i32>} : memref<1x1xf32, #tpu.memory_space<vmem>>, vector<1x1xf32>,
    %c0_24 = arith.constant 0 : index
    %c0_25 = arith.constant 0 : index
    %56 = vector.load %arg4[%c0_24, %c0_25] : memref<8x128xf32, #tpu.memory_space<vmem>>, vector<8x128xf32>
    tpu.vector_store %arg4[%c0_24, %c0_25], %53 {strides = array<i32>} : memref<8x128xf32, #tpu.memory_space<vmem>>, vector<8x128xf32>,
    return
  }
}

</mosaic_0001>

<llo_original>
// kernel: tpu_custom_call.1
$region0: #{tpu_custom_call.1}
  #allocation0 [shape = 'u32[]', space=smem, size = 0x4, offset = 0x4, fixed_abs, tag = 'smem constant byte address 0x4 - core index']
  #allocation1 [shape = 'u32[144,128]{1,0:T(1,128)}', space=vmem, size = 0x12000, scoped, tag = 'internal scratch']
  %s0 = inlined_call_operand.hbm [shape: f32[8,128], index: 0, kind: input, shape index: {}]
  %s1 = inlined_call_operand.hbm [shape: f32[8,128], index: 1, kind: input, shape index: {}]
  %s2 = inlined_call_operand.hbm [shape: f32[128,128], index: 2, kind: input, shape index: {}]
  %s3 = inlined_call_operand.hbm [shape: f32[1,1], index: 3, kind: output, shape index: {0}]
  %s4 = inlined_call_operand.hbm [shape: f32[8,128], index: 4, kind: output, shape index: {1}]
  %5 = xla_tuple %s3, %s4
  %s6 = sld [smem:[#allocation0]]
  $region49: #{tpu_custom_call.1} parent=0
    _
  %s8 = ssub.s32 1, %s6
  %s9 = scalar_select 0, %s8, %s6
  $region1: #{tpu_custom_call.1} parent=0
    #allocation2 [shape = 'u8[4096]{0}', space=vmem, size = 0x1000, scoped, tag = 'input window, operand 0, single buffered']
    #allocation3 [shape = 's32[1]{0}', space=sflag, size = 0x4, scoped, tag = 'scoped memory for tpu_custom_call.1']
    #allocation4 [shape = 's32[1]{0}', space=sflag, size = 0x4, scoped, tag = 'scoped memory for tpu_custom_call.1']
    #allocation5 [shape = 'u8[4096]{0}', space=vmem, size = 0x1000, scoped, tag = 'input window, operand 1, single buffered']
    #allocation6 [shape = 's32[1]{0}', space=sflag, size = 0x4, scoped, tag = 'scoped memory for tpu_custom_call.1']
    #allocation7 [shape = 'u8[65536]{0}', space=vmem, size = 0x10000, scoped, tag = 'input window, operand 2, single buffered']
    #allocation8 [shape = 'u8[512]{0}', space=vmem, size = 0x400, scoped, tag = 'output window, operand 0, single buffered']
    #allocation9 [shape = 'u8[4096]{0}', space=vmem, size = 0x1000, scoped, tag = 'output window, operand 1, single buffered']
    #allocation10 [shape = 's32[1]{0}', space=sflag, size = 0x4, scoped, tag = 'scoped memory for tpu_custom_call.1']
    %10 = vsyncpa [#allocation3], 0
    %11 = vsyncpa [#allocation6], 0
    %12 = vsyncpa [#allocation4], 0
    %13 = vsyncpa [#allocation10], 0
    // Predicated region
    $region2: #{tpu_custom_call.1} parent=1 // pred_check
      _
    $region3: #{tpu_custom_call.1} parent=1 // pred_check_branch
      %15 = sbr.rel (0) target = $region5
    $region4: #{tpu_custom_call.1} parent=1 // pred_region
      %s17 = ssub.s32 128, 128
      %18 = vsyncadd [#allocation3], %s17
      %s20 = sshll.u32 [#allocation2], 4
      %s21 = int_to_ptr.vmem [resolvable:$true] %s20
      %23 = dma.hbm_to_vmem [thread:$0]  %s0, 128, %s21, [#allocation3]
    $region5: #{tpu_custom_call.1} parent=1 // pred_fallthru
      _
    // Predicated region
    $region6: #{tpu_custom_call.1} parent=1 // pred_check
      _
    $region7: #{tpu_custom_call.1} parent=1 // pred_check_branch
      %25 = sbr.rel (0) target = $region9
    $region8: #{tpu_custom_call.1} parent=1 // pred_region
      %s27 = ssub.s32 128, 128
      %28 = vsyncadd [#allocation6], %s27
      %s30 = sshll.u32 [#allocation5], 4
      %s31 = int_to_ptr.vmem [resolvable:$true] %s30
      %33 = dma.hbm_to_vmem [thread:$0]  %s1, 128, %s31, [#allocation6]
    $region9: #{tpu_custom_call.1} parent=1 // pred_fallthru
      _
    // Predicated region
    $region10: #{tpu_custom_call.1} parent=1 // pred_check
      _
    $region11: #{tpu_custom_call.1} parent=1 // pred_check_branch
      %35 = sbr.rel (0) target = $region13
    $region12: #{tpu_custom_call.1} parent=1 // pred_region
      %s37 = ssub.s32 2048, 2048
      %38 = vsyncadd [#allocation6], %s37
      %s39 = sshll.u32 [#allocation7], 4
      %s40 = int_to_ptr.vmem [resolvable:$true] %s39
      %45 = dma.hbm_to_vmem [thread:$0]  %s2, 2048, %s40, [#allocation6], 128, 128, 8
    $region13: #{tpu_custom_call.1} parent=1 // pred_fallthru
      _
    // Predicated region
    $region14: #{tpu_custom_call.1} parent=1 // pred_check
      _
    $region15: #{tpu_custom_call.1} parent=1 // pred_check_branch
      %47 = sbr.rel (0) target = $region17
    $region16: #{tpu_custom_call.1} parent=1 // pred_region
      %48 = dma.done [#allocation3], 128
    $region17: #{tpu_custom_call.1} parent=1 // pred_fallthru
      _
    // Predicated region
    $region18: #{tpu_custom_call.1} parent=1 // pred_check
      _
    $region19: #{tpu_custom_call.1} parent=1 // pred_check_branch
      %50 = sbr.rel (0) target = $region21
    $region20: #{tpu_custom_call.1} parent=1 // pred_region
      %51 = dma.done [#allocation6], 128
    $region21: #{tpu_custom_call.1} parent=1 // pred_fallthru
      _
    // Predicated region
    $region22: #{tpu_custom_call.1} parent=1 // pred_check
      _
    $region23: #{tpu_custom_call.1} parent=1 // pred_check_branch
      %53 = sbr.rel (0) target = $region25
    $region24: #{tpu_custom_call.1} parent=1 // pred_region
      %54 = dma.done [#allocation6], 2048
    $region25: #{tpu_custom_call.1} parent=1 // pred_fallthru
      _
    %v55 = vld [vmem:[#allocation2] sm:$0xff]
    %v56 = vld [vmem:[#allocation5] sm:$0xff]
    %v57 = vld [vmem:[#allocation7] sm:$0xff]
    %v58 = vld [vmem:[#allocation7 + $0x8] sm:$0xff]
    %v59 = vld [vmem:[#allocation7 + $0x10] sm:$0xff]
    %v60 = vld [vmem:[#allocation7 + $0x18] sm:$0xff]
    %v61 = vld [vmem:[#allocation7 + $0x20] sm:$0xff]
    %v62 = vld [vmem:[#allocation7 + $0x28] sm:$0xff]
    %v63 = vld [vmem:[#allocation7 + $0x30] sm:$0xff]
    %v64 = vld [vmem:[#allocation7 + $0x38] sm:$0xff]
    %v65 = vld [vmem:[#allocation7 + $0x40] sm:$0xff]
    %v66 = vld [vmem:[#allocation7 + $0x48] sm:$0xff]
    %v67 = vld [vmem:[#allocation7 + $0x50] sm:$0xff]
    %v68 = vld [vmem:[#allocation7 + $0x58] sm:$0xff]
    %v69 = vld [vmem:[#allocation7 + $0x60] sm:$0xff]
    %v70 = vld [vmem:[#allocation7 + $0x68] sm:$0xff]
    %v71 = vld [vmem:[#allocation7 + $0x70] sm:$0xff]
    %v72 = vld [vmem:[#allocation7 + $0x78] sm:$0xff]
    %v73 = vmul.f32 %v57, -0.01
    %v74 = vmul.f32 %v58, -0.01
    %v75 = vmul.f32 %v59, -0.01
    %v76 = vmul.f32 %v60, -0.01
    %v77 = vmul.f32 %v61, -0.01
    %v78 = vmul.f32 %v62, -0.01
    %v79 = vmul.f32 %v63, -0.01
    %v80 = vmul.f32 %v64, -0.01
    %v81 = vmul.f32 %v65, -0.01
    %v82 = vmul.f32 %v66, -0.01
    %v83 = vmul.f32 %v67, -0.01
    %v84 = vmul.f32 %v68, -0.01
    %v85 = vmul.f32 %v69, -0.01
    %v86 = vmul.f32 %v70, -0.01
    %v87 = vmul.f32 %v71, -0.01
    %v88 = vmul.f32 %v72, -0.01
    %v89 = vmul.f32 %v73, 1.442695
    %v90 = vpow.pop %v89
    %v91 = vmul.f32 %v74, 1.442695
    %v92 = vpow.pop %v91
    %v93 = vmul.f32 %v75, 1.442695
    %v94 = vpow.pop %v93
    %v95 = vmul.f32 %v76, 1.442695
    %v96 = vpow.pop %v95
    %v97 = vmul.f32 %v77, 1.442695
    %v98 = vpow.pop %v97
    %v99 = vmul.f32 %v78, 1.442695
    %v100 = vpow.pop %v99
    %v101 = vmul.f32 %v79, 1.442695
    %v102 = vpow.pop %v101
    %v103 = vmul.f32 %v80, 1.442695
    %v104 = vpow.pop %v103
    %v105 = vmul.f32 %v81, 1.442695
    %v106 = vpow.pop %v105
    %v107 = vmul.f32 %v82, 1.442695
    %v108 = vpow.pop %v107
    %v109 = vmul.f32 %v83, 1.442695
    %v110 = vpow.pop %v109
    %v111 = vmul.f32 %v84, 1.442695
    %v112 = vpow.pop %v111
    %v113 = vmul.f32 %v85, 1.442695
    %v114 = vpow.pop %v113
    %v115 = vmul.f32 %v86, 1.442695
    %v116 = vpow.pop %v115
    %v117 = vmul.f32 %v87, 1.442695
    %v118 = vpow.pop %v117
    %v119 = vmul.f32 %v88, 1.442695
    %v120 = vpow.pop %v119
    %v121 = vadd.f32 %v55, 1e-08
    %v122 = vlog2.pop %v121
    %v123 = vmul.f32 %v122, 0.6931472
    %v124 = vadd.f32 %v56, 1e-08
    %v125 = vlog2.pop %v124
    %v126 = vmul.f32 %v125, 0.6931472
    // While loop
    $region26: #{tpu_custom_call.1} parent=1 // loop_pre_header
      _
    $region27: #{tpu_custom_call.1} parent=1 // loop_header
      %s128 = sphi 0, %s320
      %v129 = vphi -4.8520303, %v296
      %v130 = vphi -4.8520303, %v217
      %p131 = pphi 0, %p319
      %p132 = scmp.lt.s32.totalorder %s128, 50
      %p133 = pneg %p131
      %p134 = pnand %p132, %p133
      %p135 = pneg %p134
    $region28: #{tpu_custom_call.1} parent=1 // loop_header_branch
      %137 = sbr.rel (%p134) target = $region32
    $region29: #{tpu_custom_call.1} parent=1 // loop_body
      %138 = vmax.xlane.f32.xlu0 %v129
      %v139 = vpop.xlane.xlu0 %138
      %v140 = vsub.f32 %v129, %v139
      %v141 = vadd.f32 %v140, 1e-08
      %v142 = vmul.f32 %v141, 1.442695
      %v143 = vpow.pop %v142
      %144 = vmatprep.subr.mxu0 0.0
      %145 = vmatpush1.msra.mxu0 %v90
      %146 = vmatprep.subr.mxu0 0.0
      %147 = vmatpush1.msra.mxu0 %v92
      %148 = vmatprep.subr.mxu0 0.0
      %149 = vmatpush1.msra.mxu0 %v94
      %150 = vmatprep.subr.mxu0 0.0
      %151 = vmatpush1.msra.mxu0 %v96
      %152 = vmatprep.subr.mxu0 0.0
      %153 = vmatpush1.msra.mxu0 %v98
      %154 = vmatprep.subr.mxu0 0.0
      %155 = vmatpush1.msra.mxu0 %v100
      %156 = vmatprep.subr.mxu0 0.0
      %157 = vmatpush1.msra.mxu0 %v102
      %158 = vmatprep.subr.mxu0 0.0
      %159 = vmatpush1.msra.mxu0 %v104
      %160 = vmatprep.subr.mxu0 0.0
      %161 = vmatpush1.msra.mxu0 %v106
      %162 = vmatprep.subr.mxu0 0.0
      %163 = vmatpush1.msra.mxu0 %v108
      %164 = vmatprep.subr.mxu0 0.0
      %165 = vmatpush1.msra.mxu0 %v110
      %166 = vmatprep.subr.mxu0 0.0
      %167 = vmatpush1.msra.mxu0 %v112
      %168 = vmatprep.subr.mxu0 0.0
      %169 = vmatpush1.msra.mxu0 %v114
      %170 = vmatprep.subr.mxu0 0.0
      %171 = vmatpush1.msra.mxu0 %v116
      %172 = vmatprep.subr.mxu0 0.0
      %173 = vmatpush1.msra.mxu0 %v118
      %174 = vmatprep.subr.mxu0 0.0
      %175 = vmatpush1.msra.mxu0 %v120
      %176 = vmatprep.subr.mxu0 0.0
      %177 = vmatpush1.msra.mxu0 0.0
      %178 = vmatprep.subr.mxu0 0.0
      %179 = vmatpush1.msra.mxu0 0.0
      %180 = vmatprep.subr.mxu0 0.0
      %181 = vmatpush1.msra.mxu0 0.0
      %182 = vmatprep.subr.mxu0 0.0
      %183 = vmatpush1.msra.mxu0 0.0
      %184 = vmatprep.subr.mxu0 0.0
      %185 = vmatpush1.msra.mxu0 0.0
      %186 = vmatprep.subr.mxu0 0.0
      %187 = vmatpush1.msra.mxu0 0.0
      %188 = vmatprep.subr.mxu0 0.0
      %189 = vmatpush1.msra.mxu0 0.0
      %190 = vmatprep.subr.mxu0 0.0
      %191 = vmatpush1.msra.mxu0 0.0
      %192 = vmatprep.subr.mxu0 0.0
      %193 = vmatpush1.msra.mxu0 0.0
      %194 = vmatprep.subr.mxu0 0.0
      %195 = vmatpush1.msra.mxu0 0.0
      %196 = vmatprep.subr.mxu0 0.0
      %197 = vmatpush1.msra.mxu0 0.0
      %198 = vmatprep.subr.mxu0 0.0
      %199 = vmatpush1.msra.mxu0 0.0
      %200 = vmatprep.subr.mxu0 0.0
      %201 = vmatpush1.msra.mxu0 0.0
      %202 = vmatprep.subr.mxu0 0.0
      %203 = vmatpush1.msra.mxu0 0.0
      %204 = vmatprep.subr.mxu0 0.0
      %205 = vmatpush1.msra.mxu0 0.0
      %206 = vmatprep.subr.mxu0 0.0
      %207 = vmatpush1.msra.mxu0 0.0
      %208 = vmatprep.mubr.f32.mxu0 0.0
      %209 = vmatmul.mubr.f32.gmra.mrb[0].mxu0 %v143
      %v210 = vpop.f32.mrb[0].mxu0
      %v211 = vadd.f32 0.0, %v210
      %v212 = vpop.f32.mrb[0].mxu0
      %213 = vdwg.mxu0
      %v214 = vlog2.pop %v211
      %v215 = vmul.f32 %v214, 0.6931472
      %v216 = vsub.f32 %v126, %v215
      %v217 = vsub.f32 %v216, %v139
      %218 = vmax.xlane.f32.xlu0 %v217
      %v219 = vpop.xlane.xlu0 %218
      %v220 = vsub.f32 %v217, %v219
      %v221 = vmul.f32 %v220, 1.442695
      %v222 = vpow.pop %v221
      %223 = vmatprep.subr.mxu0 0.0
      %224 = vmatpush1.xpose.msra.mxu0 %v90
      %225 = vmatprep.subr.mxu0 0.0
      %226 = vmatpush1.xpose.msra.mxu0 %v92
      %227 = vmatprep.subr.mxu0 0.0
      %228 = vmatpush1.xpose.msra.mxu0 %v94
      %229 = vmatprep.subr.mxu0 0.0
      %230 = vmatpush1.xpose.msra.mxu0 %v96
      %231 = vmatprep.subr.mxu0 0.0
      %232 = vmatpush1.xpose.msra.mxu0 %v98
      %233 = vmatprep.subr.mxu0 0.0
      %234 = vmatpush1.xpose.msra.mxu0 %v100
      %235 = vmatprep.subr.mxu0 0.0
      %236 = vmatpush1.xpose.msra.mxu0 %v102
      %237 = vmatprep.subr.mxu0 0.0
      %238 = vmatpush1.xpose.msra.mxu0 %v104
      %239 = vmatprep.subr.mxu0 0.0
      %240 = vmatpush1.xpose.msra.mxu0 %v106
      %241 = vmatprep.subr.mxu0 0.0
      %242 = vmatpush1.xpose.msra.mxu0 %v108
      %243 = vmatprep.subr.mxu0 0.0
      %244 = vmatpush1.xpose.msra.mxu0 %v110
      %245 = vmatprep.subr.mxu0 0.0
      %246 = vmatpush1.xpose.msra.mxu0 %v112
      %247 = vmatprep.subr.mxu0 0.0
      %248 = vmatpush1.xpose.msra.mxu0 %v114
      %249 = vmatprep.subr.mxu0 0.0
      %250 = vmatpush1.xpose.msra.mxu0 %v116
      %251 = vmatprep.subr.mxu0 0.0
      %252 = vmatpush1.xpose.msra.mxu0 %v118
      %253 = vmatprep.subr.mxu0 0.0
      %254 = vmatpush1.xpose.msra.mxu0 %v120
      %255 = vmatprep.subr.mxu0 0.0
      %256 = vmatpush1.xpose.msra.mxu0 0.0
      %257 = vmatprep.subr.mxu0 0.0
      %258 = vmatpush1.xpose.msra.mxu0 0.0
      %259 = vmatprep.subr.mxu0 0.0
      %260 = vmatpush1.xpose.msra.mxu0 0.0
      %261 = vmatprep.subr.mxu0 0.0
      %262 = vmatpush1.xpose.msra.mxu0 0.0
      %263 = vmatprep.subr.mxu0 0.0
      %264 = vmatpush1.xpose.msra.mxu0 0.0
      %265 = vmatprep.subr.mxu0 0.0
      %266 = vmatpush1.xpose.msra.mxu0 0.0
      %267 = vmatprep.subr.mxu0 0.0
      %268 = vmatpush1.xpose.msra.mxu0 0.0
      %269 = vmatprep.subr.mxu0 0.0
      %270 = vmatpush1.xpose.msra.mxu0 0.0
      %271 = vmatprep.subr.mxu0 0.0
      %272 = vmatpush1.xpose.msra.mxu0 0.0
      %273 = vmatprep.subr.mxu0 0.0
      %274 = vmatpush1.xpose.msra.mxu0 0.0
      %275 = vmatprep.subr.mxu0 0.0
      %276 = vmatpush1.xpose.msra.mxu0 0.0
      %277 = vmatprep.subr.mxu0 0.0
      %278 = vmatpush1.xpose.msra.mxu0 0.0
      %279 = vmatprep.subr.mxu0 0.0
      %280 = vmatpush1.xpose.msra.mxu0 0.0
      %281 = vmatprep.subr.mxu0 0.0
      %282 = vmatpush1.xpose.msra.mxu0 0.0
      %283 = vmatprep.subr.mxu0 0.0
      %284 = vmatpush1.xpose.msra.mxu0 0.0
      %285 = vmatprep.subr.mxu0 0.0
      %286 = vmatpush1.xpose.msra.mxu0 0.0
      %287 = vmatprep.mubr.f32.mxu0 0.0
      %288 = vmatmul.mubr.f32.gmra.mrb[0].mxu0 %v222
      %v289 = vpop.f32.mrb[0].mxu0
      %v290 = vadd.f32 1e-08, %v289
      %v291 = vpop.f32.mrb[0].mxu0
      %292 = vdwg.mxu0
      %v293 = vlog2.pop %v290
      %v294 = vmul.f32 %v293, 0.6931472
      %v295 = vsub.f32 %v123, %v294
      %v296 = vsub.f32 %v295, %v219
      %v297 = vsub.f32 %v129, %v296
      %v298 = vmul.f32 %v297, %v297
      %299 = vadd.xlane.f32.xlu0 %v298
      %v300 = vpop.xlane.xlu0 %299
      %v301 = vrot.slane %v300, 4
      %v302 = vadd.f32 %v300, %v301
      %v303 = vrot.slane %v302, 2
      %v304 = vadd.f32 %v302, %v303
      %v305 = vrot.slane %v304, 1
      %v306 = vadd.f32 %v304, %v305
      %s307 = vtos %v306
      %v308 = vmul.f32 %v296, %v296
      %309 = vadd.xlane.f32.xlu0 %v308
      %v310 = vpop.xlane.xlu0 %309
      %v311 = vrot.slane %v310, 4
      %v312 = vadd.f32 %v310, %v311
      %v313 = vrot.slane %v312, 2
      %v314 = vadd.f32 %v312, %v313
      %v315 = vrot.slane %v314, 1
      %v316 = vadd.f32 %v314, %v315
      %s317 = vtos %v316
      %s318 = smul.f32 %s317, 1e-16
      %p319 = scmp.lt.f32.partialorder %s307, %s318
      %s320 = sadd.s32 %s128, 1
    $region30: #{tpu_custom_call.1} parent=1 // loop_footer
      _
    $region31: #{tpu_custom_call.1} parent=1 // loop_footer_branch
      %127 = sbr.rel target = $region27
    $region32: #{tpu_custom_call.1} parent=1 // loop_exit
      _
    %v321 = vmul.f32 %v57, %v90
    %v322 = vmul.f32 %v58, %v92
    %v323 = vmul.f32 %v59, %v94
    %v324 = vmul.f32 %v60, %v96
    %v325 = vmul.f32 %v61, %v98
    %v326 = vmul.f32 %v62, %v100
    %v327 = vmul.f32 %v63, %v102
    %v328 = vmul.f32 %v64, %v104
    %v329 = vmul.f32 %v65, %v106
    %v330 = vmul.f32 %v66, %v108
    %v331 = vmul.f32 %v67, %v110
    %v332 = vmul.f32 %v68, %v112
    %v333 = vmul.f32 %v69, %v114
    %v334 = vmul.f32 %v70, %v116
    %v335 = vmul.f32 %v71, %v118
    %v336 = vmul.f32 %v72, %v120
    %337 = vmax.xlane.f32.xlu0 %v130
    %v338 = vpop.xlane.xlu0 %337
    %v339 = vsub.f32 %v130, %v338
    %v340 = vmul.f32 %v339, 1.442695
    %v341 = vpow.pop %v340
    %342 = vmatprep.subr.mxu0 0.0
    %343 = vmatpush1.xpose.msra.mxu0 %v321
    %344 = vmatprep.subr.mxu0 0.0
    %345 = vmatpush1.xpose.msra.mxu0 %v322
    %346 = vmatprep.subr.mxu0 0.0
    %347 = vmatpush1.xpose.msra.mxu0 %v323
    %348 = vmatprep.subr.mxu0 0.0
    %349 = vmatpush1.xpose.msra.mxu0 %v324
    %350 = vmatprep.subr.mxu0 0.0
    %351 = vmatpush1.xpose.msra.mxu0 %v325
    %352 = vmatprep.subr.mxu0 0.0
    %353 = vmatpush1.xpose.msra.mxu0 %v326
    %354 = vmatprep.subr.mxu0 0.0
    %355 = vmatpush1.xpose.msra.mxu0 %v327
    %356 = vmatprep.subr.mxu0 0.0
    %357 = vmatpush1.xpose.msra.mxu0 %v328
    %358 = vmatprep.subr.mxu0 0.0
    %359 = vmatpush1.xpose.msra.mxu0 %v329
    %360 = vmatprep.subr.mxu0 0.0
    %361 = vmatpush1.xpose.msra.mxu0 %v330
    %362 = vmatprep.subr.mxu0 0.0
    %363 = vmatpush1.xpose.msra.mxu0 %v331
    %364 = vmatprep.subr.mxu0 0.0
    %365 = vmatpush1.xpose.msra.mxu0 %v332
    %366 = vmatprep.subr.mxu0 0.0
    %367 = vmatpush1.xpose.msra.mxu0 %v333
    %368 = vmatprep.subr.mxu0 0.0
    %369 = vmatpush1.xpose.msra.mxu0 %v334
    %370 = vmatprep.subr.mxu0 0.0
    %371 = vmatpush1.xpose.msra.mxu0 %v335
    %372 = vmatprep.subr.mxu0 0.0
    %373 = vmatpush1.xpose.msra.mxu0 %v336
    %374 = vmatprep.subr.mxu0 0.0
    %375 = vmatpush1.xpose.msra.mxu0 0.0
    %376 = vmatprep.subr.mxu0 0.0
    %377 = vmatpush1.xpose.msra.mxu0 0.0
    %378 = vmatprep.subr.mxu0 0.0
    %379 = vmatpush1.xpose.msra.mxu0 0.0
    %380 = vmatprep.subr.mxu0 0.0
    %381 = vmatpush1.xpose.msra.mxu0 0.0
    %382 = vmatprep.subr.mxu0 0.0
    %383 = vmatpush1.xpose.msra.mxu0 0.0
    %384 = vmatprep.subr.mxu0 0.0
    %385 = vmatpush1.xpose.msra.mxu0 0.0
    %386 = vmatprep.subr.mxu0 0.0
    %387 = vmatpush1.xpose.msra.mxu0 0.0
    %388 = vmatprep.subr.mxu0 0.0
    %389 = vmatpush1.xpose.msra.mxu0 0.0
    %390 = vmatprep.subr.mxu0 0.0
    %391 = vmatpush1.xpose.msra.mxu0 0.0
    %392 = vmatprep.subr.mxu0 0.0
    %393 = vmatpush1.xpose.msra.mxu0 0.0
    %394 = vmatprep.subr.mxu0 0.0
    %395 = vmatpush1.xpose.msra.mxu0 0.0
    %396 = vmatprep.subr.mxu0 0.0
    %397 = vmatpush1.xpose.msra.mxu0 0.0
    %398 = vmatprep.subr.mxu0 0.0
    %399 = vmatpush1.xpose.msra.mxu0 0.0
    %400 = vmatprep.subr.mxu0 0.0
    %401 = vmatpush1.xpose.msra.mxu0 0.0
    %402 = vmatprep.subr.mxu0 0.0
    %403 = vmatpush1.xpose.msra.mxu0 0.0
    %404 = vmatprep.subr.mxu0 0.0
    %405 = vmatpush1.xpose.msra.mxu0 0.0
    %406 = vmatprep.mubr.f32.mxu0 0.0
    %407 = vmatmul.mubr.f32.gmra.mrb[0].mxu0 %v341
    %v408 = vpop.f32.mrb[0].mxu0
    %v409 = vadd.f32 1e-08, %v408
    %v410 = vpop.f32.mrb[0].mxu0
    %411 = vdwg.mxu0
    %v412 = vlog2.pop %v409
    %v413 = vmul.f32 %v412, 0.6931472
    %v414 = vadd.f32 %v413, %v338
    %v415 = vadd.f32 %v129, %v414
    %v416 = vmul.f32 %v415, 1.442695
    %v417 = vpow.pop %v416
    %v418 = vrot.slane %v417, 4
    %v419 = vadd.f32 %v417, %v418
    %v420 = vrot.slane %v419, 2
    %v421 = vadd.f32 %v419, %v420
    %v422 = vrot.slane %v421, 1
    %v423 = vadd.f32 %v421, %v422
    %v424 = vrcp.pop 8.0
    %v425 = vmul.f32 %v423, %v424
    %426 = vadd.xlane.f32.xlu0 %v425
    %v427 = vpop.xlane.xlu0 %426
    %s428 = vtos %v427
    %v429 = vmul.f32 %v129, 100.0
    %430 = vadd.xlane.f32.xlu0 %v429
    %v431 = vpop.xlane.xlu0 %430
    %v432 = vrcp.pop 128.0
    %v433 = vmul.f32 %v431, %v432
    %v434 = vsub.f32 %v429, %v433
    %435 = vadd.xlane.f32.xlu0 %v434
    %v436 = vpop.xlane.xlu0 %435
    %v437 = vmul.f32 %v436, %v432
    %v438 = vsub.f32 %v434, %v437
    %v439 = vmul.f32 %v438, %v424
    %v440 = vstv %s428
    %vm441 = vcmask 0
    %442 = vst.msk [vmem:[#allocation8] sm:$0x1] %vm441, %v440
    %443 = vst [vmem:[#allocation9] sm:$0xff] %v439
    // Predicated region
    $region33: #{tpu_custom_call.1} parent=1 // pred_check
      _
    $region34: #{tpu_custom_call.1} parent=1 // pred_check_branch
      %445 = sbr.rel (0) target = $region36
    $region35: #{tpu_custom_call.1} parent=1 // pred_region
      %s447 = ssub.s32 16, 16
      %448 = vsyncadd [#allocation4], %s447
      %s450 = sshll.u32 [#allocation8], 4
      %s451 = int_to_ptr.vmem [resolvable:$true] %s450
      %453 = dma.vmem_to_hbm [thread:$0]  %s451, 16, %s3, [#allocation4]
    $region36: #{tpu_custom_call.1} parent=1 // pred_fallthru
      _
    // Predicated region
    $region37: #{tpu_custom_call.1} parent=1 // pred_check
      _
    $region38: #{tpu_custom_call.1} parent=1 // pred_check_branch
      %455 = sbr.rel (0) target = $region40
    $region39: #{tpu_custom_call.1} parent=1 // pred_region
      %s457 = ssub.s32 128, 128
      %458 = vsyncadd [#allocation10], %s457
      %s460 = sshll.u32 [#allocation9], 4
      %s461 = int_to_ptr.vmem [resolvable:$true] %s460
      %463 = dma.vmem_to_hbm [thread:$0]  %s461, 128, %s4, [#allocation10]
    $region40: #{tpu_custom_call.1} parent=1 // pred_fallthru
      _
    // Predicated region
    $region41: #{tpu_custom_call.1} parent=1 // pred_check
      _
    $region42: #{tpu_custom_call.1} parent=1 // pred_check_branch
      %465 = sbr.rel (0) target = $region44
    $region43: #{tpu_custom_call.1} parent=1 // pred_region
      %466 = dma.done [#allocation4], 16
    $region44: #{tpu_custom_call.1} parent=1 // pred_fallthru
      _
    // Predicated region
    $region45: #{tpu_custom_call.1} parent=1 // pred_check
      _
    $region46: #{tpu_custom_call.1} parent=1 // pred_check_branch
      %468 = sbr.rel (0) target = $region48
    $region47: #{tpu_custom_call.1} parent=1 // pred_region
      %469 = dma.done [#allocation10], 128
    $region48: #{tpu_custom_call.1} parent=1 // pred_fallthru
      _
    %470 = vsyncpa [#allocation3], 1
    %471 = vsyncpa [#allocation6], 1
    %472 = vsyncpa [#allocation4], 1
    %473 = vsyncpa [#allocation10], 1

</llo_original>
